<compile_context>
chip_gen: v6e
topology: v6e:2x2x1
jax: 0.10.0
libtpu: 0.0.40
codegen_flags: <defaults>
</compile_context>

<pallas_src>
import jax
import jax.numpy as jnp
from jax.experimental import pallas as pl
from jax.experimental.pallas import tpu as pltpu


# ----------------------------------------------------------------------------
# Helpers
# ----------------------------------------------------------------------------
def _round_up(n, m):
    return ((n + m - 1) // m) * m


def _pad_cols(a, n):
    p = n - a.shape[1]
    return a if p == 0 else jnp.pad(a, ((0, 0), (0, p)))


def _pad_rows(a, n):
    p = n - a.shape[0]
    return a if p == 0 else jnp.pad(a, ((0, p), (0, 0)))


# ----------------------------------------------------------------------------
# Kernel
# ----------------------------------------------------------------------------
def _mlp_kernel(x_ref, w1_ref, b1_ref, w2_ref, b2_ref, w3_ref, b3_ref, out_ref):
    # ---- Layer 1: Linear + ReLU.  x streamed as f32, packed to bf16 in-register
    #      right before the MXU dot; accumulate in f32. ----
    x = x_ref[...].astype(jnp.bfloat16)
    h = jnp.dot(x, w1_ref[...], preferred_element_type=jnp.float32)
    h = jnp.maximum(h + b1_ref[...], 0.0)                 # f32 VPU (v5e-safe)

    # ---- Layer 2: Linear + ReLU (MXU); cast down only at the dot input. ----
    h = jnp.dot(h.astype(jnp.bfloat16), w2_ref[...],
                preferred_element_type=jnp.float32)
    h = jnp.maximum(h + b2_ref[...], 0.0)                 # [TB, h2p] f32, lane-dense

    # ---- Layer 3 on the MXU: W3 zero-padded to [h2p, 128] in f32 (exact math,
    #      matches the original f32 output projection).  The result is a
    #      lane-dense [TB, 128] slab; only the store narrows to out_dim. ----
    o = jnp.dot(h, w3_ref[...], preferred_element_type=jnp.float32)
    o = o + b3_ref[...]
    out_ref[...] = o[:, : out_ref.shape[-1]].astype(out_ref.dtype)


# ----------------------------------------------------------------------------
# Wrapper
# ----------------------------------------------------------------------------
def _prepare_params(params):
    """Cast layer-1/2 weights to bf16, keep biases and the output projection in
    f32, and zero-pad hidden dims / output lanes up to multiples of 128 so every
    intermediate is lane-dense.  Zero padding keeps the math exact."""
    w1, b1, w2, b2, w3, b3 = (params[k] for k in ("w1", "b1", "w2", "b2", "w3", "b3"))
    h1, h2 = w2.shape
    out_dim = w3.shape[1]
    h1p, h2p = _round_up(h1, 128), _round_up(h2, 128)
    odp = _round_up(out_dim, 128)

    w1p = _pad_cols(w1.astype(jnp.float32), h1p).astype(jnp.bfloat16)    # [in,  h1p]
    b1p = _pad_cols(b1.astype(jnp.float32), h1p)                         # [1,   h1p]
    w2p = _pad_cols(_pad_rows(w2.astype(jnp.float32), h1p), h2p).astype(jnp.bfloat16)
    b2p = _pad_cols(b2.astype(jnp.float32), h2p)                         # [1,   h2p]
    w3p = _pad_cols(_pad_rows(w3.astype(jnp.float32), h2p), odp)         # [h2p, odp] f32
    b3p = _pad_cols(b3.astype(jnp.float32), odp)                         # [1,   odp] f32
    return w1p, b1p, w2p, b2p, w3p, b3p, out_dim


def dnn_regressor_forward(x, params, *, block_batch=4096):
    """x: [B, input_dim] float32. params: dict of (w1,b1,w2,b2,w3,b3) with
    weights stored as [in, out] and biases as [1, out]."""
    w1, b1, w2, b2, w3, b3, out_dim = _prepare_params(params)
    B, in_dim = x.shape

    # --- Batch tile selection ---
    # Balanced tiles (cdiv) bound padding waste to < 1 tile regardless of B, and
    # when B is large enough we force >= 2 grid steps so the "parallel" batch
    # axis gives both v7x TensorCores work (no-op on v5e/v6e).  Tiles are a
    # multiple of 16 for bf16 sublane packing.
    if B > 2 * 16:
        n_steps = max(2, pl.cdiv(B, block_batch))
    else:
        n_steps = 1
    tb = _round_up(pl.cdiv(B, n_steps), 16)
    b_pad = _round_up(B, tb)
    grid = (b_pad // tb,)

    x_in = x.astype(jnp.float32)
    if b_pad != B:
        x_in = jnp.pad(x_in, ((0, b_pad - B), (0, 0)))

    def const_spec(a):
        # Weights/biases: same block every grid step -> stay VMEM-resident.
        return pl.BlockSpec(a.shape, lambda i: (0,) * a.ndim)

    h1p, h2p = w1.shape[1], w2.shape[1]
    odp = w3.shape[1]
    flops = 2 * b_pad * (in_dim * h1p + h1p * h2p + h2p * odp)
    bytes_accessed = (x_in.size * 4
                      + w1.size * 2 + w2.size * 2
                      + (b1.size + b2.size + w3.size + b3.size) * 4
                      + b_pad * out_dim * 4)

    out = pl.pallas_call(
        _mlp_kernel,
        out_shape=jax.ShapeDtypeStruct((b_pad, out_dim), jnp.float32),
        grid=grid,
        in_specs=[
            pl.BlockSpec((tb, in_dim), lambda i: (i, 0)),   # x: tiled on batch
            const_spec(w1), const_spec(b1),
            const_spec(w2), const_spec(b2),
            const_spec(w3), const_spec(b3),
        ],
        out_specs=pl.BlockSpec((tb, out_dim), lambda i: (i, 0)),
        compiler_params=pltpu.CompilerParams(
            dimension_semantics=("parallel",),              # v7x: shard over 2 TCs
            vmem_limit_bytes=32 * 1024 * 1024,
        ),
        cost_estimate=pl.CostEstimate(
            flops=flops, transcendentals=0, bytes_accessed=bytes_accessed),
    )(x_in, w1, b1, w2, b2, w3, b3)

    return out[:B]


# ----------------------------------------------------------------------------
# Params / references
# ----------------------------------------------------------------------------
def init_params(key, input_dim, hidden_dims=(128, 64), output_dim=2):
    """Deterministic synthetic init (PyTorch-style uniform bounds); weights
    already transposed to [in, out], biases kept 2D [1, out]."""
    params = {}
    dims = [input_dim] + list(hidden_dims) + [output_dim]
    names = [("w1", "b1"), ("w2", "b2"), ("w3", "b3")]
    for (wn, bn), d_in, d_out in zip(names, dims[:-1], dims[1:]):
        key, kw, kb = jax.random.split(key, 3)
        bound = 1.0 / (d_in ** 0.5)
        params[wn] = jax.random.uniform(kw, (d_in, d_out), jnp.float32, -bound, bound)
        params[bn] = jax.random.uniform(kb, (1, d_out), jnp.float32, -bound, bound)
    return params


def reference_forward_bf16(x, params):
    """Reference mirroring the kernel's precision (bf16 layer-1/2 dots with f32
    accumulate, f32 output projection)."""
    w1 = params["w1"].astype(jnp.bfloat16)
    w2 = params["w2"].astype(jnp.bfloat16)
    h = jnp.dot(x.astype(jnp.bfloat16), w1, preferred_element_type=jnp.float32)
    h = jnp.maximum(h + params["b1"], 0.0)
    h = jnp.dot(h.astype(jnp.bfloat16), w2, preferred_element_type=jnp.float32)
    h = jnp.maximum(h + params["b2"], 0.0)
    return h @ params["w3"] + params["b3"]


def reference_forward_f32(x, params):
    """Full-precision reference of the original PyTorch module."""
    h = jnp.maximum(x @ params["w1"] + params["b1"], 0.0)
    h = jnp.maximum(h @ params["w2"] + params["b2"], 0.0)
    return h @ params["w3"] + params["b3"]


# ----------------------------------------------------------------------------
# Demo / correctness check
# ----------------------------------------------------------------------------
if __name__ == "__main__":
    key = jax.random.PRNGKey(0)
    key, kx = jax.random.split(key)

    batch, input_dim = 8, 32
    x = jax.random.normal(kx, (batch, input_dim), jnp.float32)
    params = init_params(key, input_dim, hidden_dims=(128, 64), output_dim=2)

    out = dnn_regressor_forward(x, params)
    out = jax.block_until_ready(out)
    assert out.shape == (batch, 2)

    ref_matched = reference_forward_bf16(x, params)
    assert jnp.allclose(out, ref_matched, atol=1e-2, rtol=1e-2)

    ref_f32 = reference_forward_f32(x, params)
    assert jnp.allclose(out, ref_f32, atol=1e-1, rtol=1e-1)

    # Also exercise a multi-tile grid (multiple batch tiles, uneven B).
    key, kx2 = jax.random.split(key)
    x_big = jax.random.normal(kx2, (1030, input_dim), jnp.float32)
    out_big = jax.block_until_ready(
        dnn_regressor_forward(x_big, params, block_batch=512))
    assert out_big.shape == (1030, 2)
    assert jnp.allclose(out_big, reference_forward_bf16(x_big, params),
                        atol=1e-2, rtol=1e-2)

    print("KERNEL_OK")
</pallas_src>

<mosaic_0001>
module attributes {stable_mosaic.version = 11 : i64} {
  func.func @_mlp_kernel(%arg0: i32, %arg1: memref<16x32xf32, #tpu.memory_space<vmem>>, %arg2: memref<32x128xbf16, #tpu.memory_space<vmem>>, %arg3: memref<1x128xf32, #tpu.memory_space<vmem>>, %arg4: memref<128x128xbf16, #tpu.memory_space<vmem>>, %arg5: memref<1x128xf32, #tpu.memory_space<vmem>>, %arg6: memref<128x128xf32, #tpu.memory_space<vmem>>, %arg7: memref<1x128xf32, #tpu.memory_space<vmem>>, %arg8: memref<16x2xf32, #tpu.memory_space<vmem>>) attributes {dimension_semantics = [#tpu.dimension_semantics<parallel>], iteration_bounds = array<i64: 1>, scalar_prefetch = 0 : i64, scratch_operands = 0 : i64, tpu.core_type = #tpu.core_type<tc>, window_params = [{transform_indices = @transform_0, window_bounds = array<i64: 16, 32>}, {pipeline_mode = #tpu.pipeline_mode<synchronous>, transform_indices = @transform_1, window_bounds = array<i64: 32, 128>}, {pipeline_mode = #tpu.pipeline_mode<synchronous>, transform_indices = @transform_2, window_bounds = array<i64: 1, 128>}, {pipeline_mode = #tpu.pipeline_mode<synchronous>, transform_indices = @transform_3, window_bounds = array<i64: 128, 128>}, {pipeline_mode = #tpu.pipeline_mode<synchronous>, transform_indices = @transform_4, window_bounds = array<i64: 1, 128>}, {pipeline_mode = #tpu.pipeline_mode<synchronous>, transform_indices = @transform_5, window_bounds = array<i64: 128, 128>}, {pipeline_mode = #tpu.pipeline_mode<synchronous>, transform_indices = @transform_6, window_bounds = array<i64: 1, 128>}, {transform_indices = @transform_7, window_bounds = array<i64: 16, 2>}]} {
    %c0 = arith.constant 0 : index
    %c0_0 = arith.constant 0 : index
    %0 = vector.load %arg1[%c0, %c0_0] : memref<16x32xf32, #tpu.memory_space<vmem>>, vector<16x32xf32>
    %1 = arith.truncf %0 : vector<16x32xf32> to vector<16x32xbf16>
    %c0_1 = arith.constant 0 : index
    %c0_2 = arith.constant 0 : index
    %2 = vector.load %arg2[%c0_1, %c0_2] : memref<32x128xbf16, #tpu.memory_space<vmem>>, vector<32x128xbf16>
    %cst = arith.constant dense<0.000000e+00> : vector<16x128xf32>
    %3 = tpu.matmul %1, %2, %cst {dimension_numbers = #tpu.dot_dimension_numbers<[1], [0], [0], [1], [0, 0, 1, 1], [], []>} : vector<16x32xbf16>, vector<32x128xbf16>, vector<16x128xf32> -> vector<16x128xf32>
    %c0_3 = arith.constant 0 : index
    %c0_4 = arith.constant 0 : index
    %4 = vector.load %arg3[%c0_3, %c0_4] : memref<1x128xf32, #tpu.memory_space<vmem>>, vector<1x128xf32>
    %5 = vector.broadcast %4 : vector<1x128xf32> to vector<16x128xf32>
    %6 = arith.addf %3, %5 : vector<16x128xf32>
    %cst_5 = arith.constant 0.000000e+00 : f32
    %7 = vector.broadcast %cst_5 : f32 to vector<16x128xf32>
    %8 = arith.maximumf %6, %7 : vector<16x128xf32>
    %9 = arith.truncf %8 : vector<16x128xf32> to vector<16x128xbf16>
    %c0_6 = arith.constant 0 : index
    %c0_7 = arith.constant 0 : index
    %10 = vector.load %arg4[%c0_6, %c0_7] : memref<128x128xbf16, #tpu.memory_space<vmem>>, vector<128x128xbf16>
    %cst_8 = arith.constant dense<0.000000e+00> : vector<16x128xf32>
    %11 = tpu.matmul %9, %10, %cst_8 {dimension_numbers = #tpu.dot_dimension_numbers<[1], [0], [0], [1], [0, 0, 1, 1], [], []>} : vector<16x128xbf16>, vector<128x128xbf16>, vector<16x128xf32> -> vector<16x128xf32>
    %c0_9 = arith.constant 0 : index
    %c0_10 = arith.constant 0 : index
    %12 = vector.load %arg5[%c0_9, %c0_10] : memref<1x128xf32, #tpu.memory_space<vmem>>, vector<1x128xf32>
    %13 = vector.broadcast %12 : vector<1x128xf32> to vector<16x128xf32>
    %14 = arith.addf %11, %13 : vector<16x128xf32>
    %cst_11 = arith.constant 0.000000e+00 : f32
    %15 = vector.broadcast %cst_11 : f32 to vector<16x128xf32>
    %16 = arith.maximumf %14, %15 : vector<16x128xf32>
    %c0_12 = arith.constant 0 : index
    %c0_13 = arith.constant 0 : index
    %17 = vector.load %arg6[%c0_12, %c0_13] : memref<128x128xf32, #tpu.memory_space<vmem>>, vector<128x128xf32>
    %cst_14 = arith.constant dense<0.000000e+00> : vector<16x128xf32>
    %18 = tpu.matmul %16, %17, %cst_14 {dimension_numbers = #tpu.dot_dimension_numbers<[1], [0], [0], [1], [0, 0, 1, 1], [], []>} : vector<16x128xf32>, vector<128x128xf32>, vector<16x128xf32> -> vector<16x128xf32>
    %c0_15 = arith.constant 0 : index
    %c0_16 = arith.constant 0 : index
    %19 = vector.load %arg7[%c0_15, %c0_16] : memref<1x128xf32, #tpu.memory_space<vmem>>, vector<1x128xf32>
    %20 = vector.broadcast %19 : vector<1x128xf32> to vector<16x128xf32>
    %21 = arith.addf %18, %20 : vector<16x128xf32>
    %22 = vector.extract_strided_slice %21 {offsets = [0, 0], sizes = [16, 2], strides = [1, 1]} : vector<16x128xf32> to vector<16x2xf32>
    %c0_17 = arith.constant 0 : index
    %c0_18 = arith.constant 0 : index
    %23 = vector.load %arg8[%c0_17, %c0_18] : memref<16x2xf32, #tpu.memory_space<vmem>>, vector<16x2xf32>
    tpu.vector_store %arg8[%c0_17, %c0_18], %22 {strides = array<i32>} : memref<16x2xf32, #tpu.memory_space<vmem>>, vector<16x2xf32>,
    return
  }
  func.func @transform_0(%arg0: i32) -> (i32, i32) {
    %c0_i32 = arith.constant 0 : i32
    %c0_i32_0 = arith.constant 0 : i32
    return %arg0, %c0_i32 : i32, i32
  }
  func.func @transform_1(%arg0: i32) -> (i32, i32) {
    %c0_i32 = arith.constant 0 : i32
    %c0_i32_0 = arith.constant 0 : i32
    %c0_i32_1 = arith.constant 0 : i32
    return %c0_i32, %c0_i32_0 : i32, i32
  }
  func.func @transform_2(%arg0: i32) -> (i32, i32) {
    %c0_i32 = arith.constant 0 : i32
    %c0_i32_0 = arith.constant 0 : i32
    %c0_i32_1 = arith.constant 0 : i32
    return %c0_i32, %c0_i32_0 : i32, i32
  }
  func.func @transform_3(%arg0: i32) -> (i32, i32) {
    %c0_i32 = arith.constant 0 : i32
    %c0_i32_0 = arith.constant 0 : i32
    %c0_i32_1 = arith.constant 0 : i32
    return %c0_i32, %c0_i32_0 : i32, i32
  }
  func.func @transform_4(%arg0: i32) -> (i32, i32) {
    %c0_i32 = arith.constant 0 : i32
    %c0_i32_0 = arith.constant 0 : i32
    %c0_i32_1 = arith.constant 0 : i32
    return %c0_i32, %c0_i32_0 : i32, i32
  }
  func.func @transform_5(%arg0: i32) -> (i32, i32) {
    %c0_i32 = arith.constant 0 : i32
    %c0_i32_0 = arith.constant 0 : i32
    %c0_i32_1 = arith.constant 0 : i32
    return %c0_i32, %c0_i32_0 : i32, i32
  }
  func.func @transform_6(%arg0: i32) -> (i32, i32) {
    %c0_i32 = arith.constant 0 : i32
    %c0_i32_0 = arith.constant 0 : i32
    %c0_i32_1 = arith.constant 0 : i32
    return %c0_i32, %c0_i32_0 : i32, i32
  }
  func.func @transform_7(%arg0: i32) -> (i32, i32) {
    %c0_i32 = arith.constant 0 : i32
    %c0_i32_0 = arith.constant 0 : i32
    return %arg0, %c0_i32 : i32, i32
  }
}

</mosaic_0001>

<llo_original>
// kernel: tpu_custom_call.1
$region0: #{tpu_custom_call.1}
  #allocation0 [shape = 'u32[]', space=smem, size = 0x4, offset = 0x4, fixed_abs, tag = 'smem constant byte address 0x4 - core index']
  #allocation1 [shape = 'u32[144,128]{1,0:T(1,128)}', space=vmem, size = 0x12000, scoped, tag = 'internal scratch']
  %s0 = inlined_call_operand.hbm [shape: f32[16,32], index: 0, kind: input, shape index: {}]
  %s1 = inlined_call_operand.hbm [shape: bf16[32,128], index: 1, kind: input, shape index: {}]
  %s2 = inlined_call_operand.vmem [shape: f32[1,128], index: 2, kind: input, shape index: {}]
  %s3 = inlined_call_operand.hbm [shape: bf16[128,128], index: 3, kind: input, shape index: {}]
  %s4 = inlined_call_operand.vmem [shape: f32[1,128], index: 4, kind: input, shape index: {}]
  %s5 = inlined_call_operand.hbm [shape: f32[128,128], index: 5, kind: input, shape index: {}]
  %s6 = inlined_call_operand.vmem [shape: f32[1,128], index: 6, kind: input, shape index: {}]
  %s7 = inlined_call_operand.vmem [shape: f32[16,2], index: 7, kind: output, shape index: {}]
  %s8 = sld [smem:[#allocation0]]
  $region54: #{tpu_custom_call.1} parent=0
    _
  %s10 = ssub.s32 1, %s8
  %s11 = scalar_select 0, %s10, %s8
  $region1: #{tpu_custom_call.1} parent=0
    #allocation2 [shape = 'u8[8192]{0}', space=vmem, size = 0x2000, scoped, tag = 'input window, operand 0, single buffered']
    #allocation3 [shape = 's32[1]{0}', space=sflag, size = 0x4, scoped, tag = 'scoped memory for tpu_custom_call.1']
    #allocation4 [shape = 'u8[8192]{0}', space=vmem, size = 0x2000, scoped, tag = 'input window, operand 1, single buffered']
    #allocation5 [shape = 's32[1]{0}', space=sflag, size = 0x4, scoped, tag = 'scoped memory for tpu_custom_call.1']
    #allocation6 [shape = 'u8[32768]{0}', space=vmem, size = 0x8000, scoped, tag = 'input window, operand 3, single buffered']
    #allocation7 [shape = 'u8[65536]{0}', space=vmem, size = 0x10000, scoped, tag = 'input window, operand 5, single buffered']
    #allocation8 [shape = 's32[1]{0}', space=sflag, size = 0x4, scoped, tag = 'scoped memory for tpu_custom_call.1']
    %12 = vsyncpa [#allocation3], 0
    %13 = vsyncpa [#allocation5], 0
    %14 = vsyncpa [#allocation8], 0
    // Predicated region
    $region2: #{tpu_custom_call.1} parent=1 // pred_check
      _
    $region3: #{tpu_custom_call.1} parent=1 // pred_check_branch
      %16 = sbr.rel (0) target = $region5
    $region4: #{tpu_custom_call.1} parent=1 // pred_region
      %s18 = ssub.s32 256, 256
      %19 = vsyncadd [#allocation3], %s18
      %s20 = sshll.u32 [#allocation2], 4
      %s21 = int_to_ptr.vmem [resolvable:$true] %s20
      %26 = dma.hbm_to_vmem [thread:$0]  %s0, 256, %s21, [#allocation3], 128, 128, 8
    $region5: #{tpu_custom_call.1} parent=1 // pred_fallthru
      _
    // Predicated region
    $region6: #{tpu_custom_call.1} parent=1 // pred_check
      _
    $region7: #{tpu_custom_call.1} parent=1 // pred_check_branch
      %28 = sbr.rel (0) target = $region9
    $region8: #{tpu_custom_call.1} parent=1 // pred_region
      %s30 = ssub.s32 256, 256
      %31 = vsyncadd [#allocation5], %s30
      %s32 = sshll.u32 [#allocation4], 4
      %s33 = int_to_ptr.vmem [resolvable:$true] %s32
      %38 = dma.hbm_to_vmem [thread:$0]  %s1, 256, %s33, [#allocation5], 64, 64, 4
    $region9: #{tpu_custom_call.1} parent=1 // pred_fallthru
      _
    // Predicated region
    $region10: #{tpu_custom_call.1} parent=1 // pred_check
      _
    $region11: #{tpu_custom_call.1} parent=1 // pred_check_branch
      %40 = sbr.rel (0) target = $region13
    $region12: #{tpu_custom_call.1} parent=1 // pred_region
      _
    $region13: #{tpu_custom_call.1} parent=1 // pred_fallthru
      _
    // Predicated region
    $region14: #{tpu_custom_call.1} parent=1 // pred_check
      _
    $region15: #{tpu_custom_call.1} parent=1 // pred_check_branch
      %42 = sbr.rel (0) target = $region17
    $region16: #{tpu_custom_call.1} parent=1 // pred_region
      %s44 = ssub.s32 1024, 1024
      %45 = vsyncadd [#allocation5], %s44
      %s46 = sshll.u32 [#allocation6], 4
      %s47 = int_to_ptr.vmem [resolvable:$true] %s46
      %52 = dma.hbm_to_vmem [thread:$0]  %s3, 1024, %s47, [#allocation5], 64, 64, 4
    $region17: #{tpu_custom_call.1} parent=1 // pred_fallthru
      _
    // Predicated region
    $region18: #{tpu_custom_call.1} parent=1 // pred_check
      _
    $region19: #{tpu_custom_call.1} parent=1 // pred_check_branch
      %54 = sbr.rel (0) target = $region21
    $region20: #{tpu_custom_call.1} parent=1 // pred_region
      _
    $region21: #{tpu_custom_call.1} parent=1 // pred_fallthru
      _
    // Predicated region
    $region22: #{tpu_custom_call.1} parent=1 // pred_check
      _
    $region23: #{tpu_custom_call.1} parent=1 // pred_check_branch
      %56 = sbr.rel (0) target = $region25
    $region24: #{tpu_custom_call.1} parent=1 // pred_region
      %s58 = ssub.s32 2048, 2048
      %59 = vsyncadd [#allocation8], %s58
      %s60 = sshll.u32 [#allocation7], 4
      %s61 = int_to_ptr.vmem [resolvable:$true] %s60
      %66 = dma.hbm_to_vmem [thread:$0]  %s5, 2048, %s61, [#allocation8], 128, 128, 8
    $region25: #{tpu_custom_call.1} parent=1 // pred_fallthru
      _
    // Predicated region
    $region26: #{tpu_custom_call.1} parent=1 // pred_check
      _
    $region27: #{tpu_custom_call.1} parent=1 // pred_check_branch
      %68 = sbr.rel (0) target = $region29
    $region28: #{tpu_custom_call.1} parent=1 // pred_region
      _
    $region29: #{tpu_custom_call.1} parent=1 // pred_fallthru
      _
    // Predicated region
    $region30: #{tpu_custom_call.1} parent=1 // pred_check
      _
    $region31: #{tpu_custom_call.1} parent=1 // pred_check_branch
      %70 = sbr.rel (0) target = $region33
    $region32: #{tpu_custom_call.1} parent=1 // pred_region
      %71 = dma.done [#allocation3], 256
    $region33: #{tpu_custom_call.1} parent=1 // pred_fallthru
      _
    // Predicated region
    $region34: #{tpu_custom_call.1} parent=1 // pred_check
      _
    $region35: #{tpu_custom_call.1} parent=1 // pred_check_branch
      %73 = sbr.rel (0) target = $region37
    $region36: #{tpu_custom_call.1} parent=1 // pred_region
      %74 = dma.done [#allocation5], 256
    $region37: #{tpu_custom_call.1} parent=1 // pred_fallthru
      _
    // Predicated region
    $region38: #{tpu_custom_call.1} parent=1 // pred_check
      _
    $region39: #{tpu_custom_call.1} parent=1 // pred_check_branch
      %76 = sbr.rel (0) target = $region41
    $region40: #{tpu_custom_call.1} parent=1 // pred_region
      %77 = dma.done [#allocation5], 1024
    $region41: #{tpu_custom_call.1} parent=1 // pred_fallthru
      _
    // Predicated region
    $region42: #{tpu_custom_call.1} parent=1 // pred_check
      _
    $region43: #{tpu_custom_call.1} parent=1 // pred_check_branch
      %79 = sbr.rel (0) target = $region45
    $region44: #{tpu_custom_call.1} parent=1 // pred_region
      %80 = dma.done [#allocation8], 2048
    $region45: #{tpu_custom_call.1} parent=1 // pred_fallthru
      _
    %v82 = vld [vmem:[#allocation2] sm:$0xff]
    %v83 = vld [vmem:[#allocation2 + $0x8] sm:$0xff]
    %v84 = vpack.c.bf16 %v83, %v82
    %v85 = vld [vmem:[#allocation4] sm:$0xf]
    %v86 = vld [vmem:[#allocation4 + $0x4] sm:$0xf]
    %v87 = vld [vmem:[#allocation4 + $0x8] sm:$0xf]
    %v88 = vld [vmem:[#allocation4 + $0xc] sm:$0xf]
    %v89 = vld [vmem:[%s2] sm:$0x1]
    %v91 = vlaneseq
    %v92 = vshrl.u32 %v91, 7
    %v93 = vsub.s32 0, %v92
    %v94 = vrot.slane %v89, %v93
    %v100 = vunpack.c.l.b16 %v85
    %v101 = vunpack.c.l.b16 %v86
    %v102 = vunpack.c.l.b16 %v87
    %v103 = vunpack.c.l.b16 %v88
    %v104 = vpack.c.b16 %v101, %v100
    %v105 = vpack.c.b16 %v103, %v102
    %vm108 = vcmask 261120
    %v110 = vsel %vm108, %v84, 0
    %112 = vmatprep.subr.bf16.mxu0 0
    %113 = vmatpush1.bf16.msra.mxu0 0
    %114 = vmatprep.subr.bf16.mxu0 0
    %115 = vmatpush1.bf16.msra.mxu0 0
    %116 = vmatprep.subr.bf16.mxu0 0
    %117 = vmatpush1.bf16.msra.mxu0 0
    %118 = vmatprep.subr.bf16.mxu0 0
    %119 = vmatpush1.bf16.msra.mxu0 0
    %120 = vmatprep.subr.bf16.mxu0 0
    %121 = vmatpush1.bf16.msra.mxu0 0
    %122 = vmatprep.subr.bf16.mxu0 0
    %123 = vmatpush1.bf16.msra.mxu0 0
    %124 = vmatprep.subr.bf16.mxu0 0
    %125 = vmatpush1.bf16.msra.mxu0 %v105
    %126 = vmatprep.subr.bf16.mxu0 0
    %127 = vmatpush1.bf16.msra.mxu0 %v104
    %128 = vmatprep.subr.bf16.mxu0 0
    %129 = vmatpush2.bf16.msra.mxu0 0
    %130 = vmatprep.subr.bf16.mxu0 0
    %131 = vmatpush2.bf16.msra.mxu0 0
    %132 = vmatprep.subr.bf16.mxu0 0
    %133 = vmatpush2.bf16.msra.mxu0 0
    %134 = vmatprep.subr.bf16.mxu0 0
    %135 = vmatpush2.bf16.msra.mxu0 0
    %136 = vmatprep.subr.bf16.mxu0 0
    %137 = vmatpush2.bf16.msra.mxu0 0
    %138 = vmatprep.subr.bf16.mxu0 0
    %139 = vmatpush2.bf16.msra.mxu0 0
    %140 = vmatprep.subr.bf16.mxu0 0
    %141 = vmatpush2.bf16.msra.mxu0 0
    %142 = vmatprep.subr.bf16.mxu0 0
    %143 = vmatpush2.bf16.msra.mxu0 0
    %144 = vmatprep.mubr.bf16.mxu0 0
    %145 = vmatmul.mubr.bf16.gmra.mxu0 %v110
    %v146 = vpop.f32.mrf.mxu0
    %v147 = vadd.f32 %v94, %v146
    %v148 = vpop.f32.mrf.mxu0
    %v149 = vpop.f32.mrf.mxu0
    %v150 = vadd.f32 %v94, %v149
    %v151 = vpop.f32.mrf.mxu0
    %152 = vdwg.mxu0
    %v153 = vmax.f32 %v147, 0.0
    %v154 = vmax.f32 %v150, 0.0
    %v155 = vpack.c.bf16 %v154, %v153
    %v156 = vld [vmem:[#allocation6] sm:$0xf]
    %v157 = vld [vmem:[#allocation6 + $0x4] sm:$0xf]
    %v158 = vld [vmem:[#allocation6 + $0x8] sm:$0xf]
    %v159 = vld [vmem:[#allocation6 + $0xc] sm:$0xf]
    %v160 = vld [vmem:[#allocation6 + $0x10] sm:$0xf]
    %v161 = vld [vmem:[#allocation6 + $0x14] sm:$0xf]
    %v162 = vld [vmem:[#allocation6 + $0x18] sm:$0xf]
    %v163 = vld [vmem:[#allocation6 + $0x1c] sm:$0xf]
    %v164 = vld [vmem:[#allocation6 + $0x20] sm:$0xf]
    %v165 = vld [vmem:[#allocation6 + $0x24] sm:$0xf]
    %v166 = vld [vmem:[#allocation6 + $0x28] sm:$0xf]
    %v167 = vld [vmem:[#allocation6 + $0x2c] sm:$0xf]
    %v168 = vld [vmem:[#allocation6 + $0x30] sm:$0xf]
    %v169 = vld [vmem:[#allocation6 + $0x34] sm:$0xf]
    %v170 = vld [vmem:[#allocation6 + $0x38] sm:$0xf]
    %v171 = vld [vmem:[#allocation6 + $0x3c] sm:$0xf]
    %v172 = vld [vmem:[%s4] sm:$0x1]
    %v174 = vlaneseq
    %v175 = vshrl.u32 %v174, 7
    %v176 = vsub.s32 0, %v175
    %v177 = vrot.slane %v172, %v176
    %v195 = vunpack.c.l.b16 %v156
    %v196 = vunpack.c.l.b16 %v157
    %v197 = vunpack.c.l.b16 %v158
    %v198 = vunpack.c.l.b16 %v159
    %v199 = vunpack.c.l.b16 %v160
    %v200 = vunpack.c.l.b16 %v161
    %v201 = vunpack.c.l.b16 %v162
    %v202 = vunpack.c.l.b16 %v163
    %v203 = vunpack.c.l.b16 %v164
    %v204 = vunpack.c.l.b16 %v165
    %v205 = vunpack.c.l.b16 %v166
    %v206 = vunpack.c.l.b16 %v167
    %v207 = vunpack.c.l.b16 %v168
    %v208 = vunpack.c.l.b16 %v169
    %v209 = vunpack.c.l.b16 %v170
    %v210 = vunpack.c.l.b16 %v171
    %v211 = vpack.c.b16 %v196, %v195
    %v212 = vpack.c.b16 %v198, %v197
    %v213 = vpack.c.b16 %v200, %v199
    %v214 = vpack.c.b16 %v202, %v201
    %v215 = vpack.c.b16 %v204, %v203
    %v216 = vpack.c.b16 %v206, %v205
    %v217 = vpack.c.b16 %v208, %v207
    %v218 = vpack.c.b16 %v210, %v209
    %227 = vmatprep.subr.bf16.mxu0 0
    %228 = vmatpush1.bf16.msra.mxu0 %v218
    %229 = vmatprep.subr.bf16.mxu0 0
    %230 = vmatpush1.bf16.msra.mxu0 %v217
    %231 = vmatprep.subr.bf16.mxu0 0
    %232 = vmatpush1.bf16.msra.mxu0 %v216
    %233 = vmatprep.subr.bf16.mxu0 0
    %234 = vmatpush1.bf16.msra.mxu0 %v215
    %235 = vmatprep.subr.bf16.mxu0 0
    %236 = vmatpush1.bf16.msra.mxu0 %v214
    %237 = vmatprep.subr.bf16.mxu0 0
    %238 = vmatpush1.bf16.msra.mxu0 %v213
    %239 = vmatprep.subr.bf16.mxu0 0
    %240 = vmatpush1.bf16.msra.mxu0 %v212
    %241 = vmatprep.subr.bf16.mxu0 0
    %242 = vmatpush1.bf16.msra.mxu0 %v211
    %243 = vmatprep.subr.bf16.mxu0 0
    %244 = vmatpush2.bf16.msra.mxu0 0
    %245 = vmatprep.subr.bf16.mxu0 0
    %246 = vmatpush2.bf16.msra.mxu0 0
    %247 = vmatprep.subr.bf16.mxu0 0
    %248 = vmatpush2.bf16.msra.mxu0 0
    %249 = vmatprep.subr.bf16.mxu0 0
    %250 = vmatpush2.bf16.msra.mxu0 0
    %251 = vmatprep.subr.bf16.mxu0 0
    %252 = vmatpush2.bf16.msra.mxu0 0
    %253 = vmatprep.subr.bf16.mxu0 0
    %254 = vmatpush2.bf16.msra.mxu0 0
    %255 = vmatprep.subr.bf16.mxu0 0
    %256 = vmatpush2.bf16.msra.mxu0 0
    %257 = vmatprep.subr.bf16.mxu0 0
    %258 = vmatpush2.bf16.msra.mxu0 0
    %259 = vmatprep.mubr.bf16.mxu0 0
    %260 = vmatmul.mubr.bf16.gmra.mxu0 %v155
    %v261 = vpop.f32.mrf.mxu0
    %v262 = vadd.f32 %v177, %v261
    %v263 = vpop.f32.mrf.mxu0
    %v264 = vpop.f32.mrf.mxu0
    %v265 = vadd.f32 %v177, %v264
    %v266 = vpop.f32.mrf.mxu0
    %267 = vdwg.mxu0
    %v268 = vmax.f32 %v262, 0.0
    %v269 = vmax.f32 %v265, 0.0
    %v270 = vld [vmem:[#allocation7] sm:$0xff]
    %v271 = vld [vmem:[#allocation7 + $0x8] sm:$0xff]
    %v272 = vld [vmem:[#allocation7 + $0x10] sm:$0xff]
    %v273 = vld [vmem:[#allocation7 + $0x18] sm:$0xff]
    %v274 = vld [vmem:[#allocation7 + $0x20] sm:$0xff]
    %v275 = vld [vmem:[#allocation7 + $0x28] sm:$0xff]
    %v276 = vld [vmem:[#allocation7 + $0x30] sm:$0xff]
    %v277 = vld [vmem:[#allocation7 + $0x38] sm:$0xff]
    %v278 = vld [vmem:[#allocation7 + $0x40] sm:$0xff]
    %v279 = vld [vmem:[#allocation7 + $0x48] sm:$0xff]
    %v280 = vld [vmem:[#allocation7 + $0x50] sm:$0xff]
    %v281 = vld [vmem:[#allocation7 + $0x58] sm:$0xff]
    %v282 = vld [vmem:[#allocation7 + $0x60] sm:$0xff]
    %v283 = vld [vmem:[#allocation7 + $0x68] sm:$0xff]
    %v284 = vld [vmem:[#allocation7 + $0x70] sm:$0xff]
    %v285 = vld [vmem:[#allocation7 + $0x78] sm:$0xff]
    %v286 = vld [vmem:[%s6] sm:$0x1]
    %v288 = vlaneseq
    %v289 = vshrl.u32 %v288, 7
    %v290 = vsub.s32 0, %v289
    %v291 = vrot.slane %v286, %v290
    %293 = vmatprep.subr.mxu0 0.0
    %294 = vmatpush1.msra.mxu0 %v285
    %295 = vmatprep.subr.mxu0 0.0
    %296 = vmatpush1.msra.mxu0 %v284
    %297 = vmatprep.subr.mxu0 0.0
    %298 = vmatpush1.msra.mxu0 %v283
    %299 = vmatprep.subr.mxu0 0.0
    %300 = vmatpush1.msra.mxu0 %v282
    %301 = vmatprep.subr.mxu0 0.0
    %302 = vmatpush1.msra.mxu0 %v281
    %303 = vmatprep.subr.mxu0 0.0
    %304 = vmatpush1.msra.mxu0 %v280
    %305 = vmatprep.subr.mxu0 0.0
    %306 = vmatpush1.msra.mxu0 %v279
    %307 = vmatprep.subr.mxu0 0.0
    %308 = vmatpush1.msra.mxu0 %v278
    %309 = vmatprep.subr.mxu0 0.0
    %310 = vmatpush1.msra.mxu0 %v277
    %311 = vmatprep.subr.mxu0 0.0
    %312 = vmatpush1.msra.mxu0 %v276
    %313 = vmatprep.subr.mxu0 0.0
    %314 = vmatpush1.msra.mxu0 %v275
    %315 = vmatprep.subr.mxu0 0.0
    %316 = vmatpush1.msra.mxu0 %v274
    %317 = vmatprep.subr.mxu0 0.0
    %318 = vmatpush1.msra.mxu0 %v273
    %319 = vmatprep.subr.mxu0 0.0
    %320 = vmatpush1.msra.mxu0 %v272
    %321 = vmatprep.subr.mxu0 0.0
    %322 = vmatpush1.msra.mxu0 %v271
    %323 = vmatprep.subr.mxu0 0.0
    %324 = vmatpush1.msra.mxu0 %v270
    %325 = vmatprep.subr.mxu0 0.0
    %326 = vmatpush2.msra.mxu0 0.0
    %327 = vmatprep.subr.mxu0 0.0
    %328 = vmatpush2.msra.mxu0 0.0
    %329 = vmatprep.subr.mxu0 0.0
    %330 = vmatpush2.msra.mxu0 0.0
    %331 = vmatprep.subr.mxu0 0.0
    %332 = vmatpush2.msra.mxu0 0.0
    %333 = vmatprep.subr.mxu0 0.0
    %334 = vmatpush2.msra.mxu0 0.0
    %335 = vmatprep.subr.mxu0 0.0
    %336 = vmatpush2.msra.mxu0 0.0
    %337 = vmatprep.subr.mxu0 0.0
    %338 = vmatpush2.msra.mxu0 0.0
    %339 = vmatprep.subr.mxu0 0.0
    %340 = vmatpush2.msra.mxu0 0.0
    %341 = vmatprep.subr.mxu0 0.0
    %342 = vmatpush2.msra.mxu0 0.0
    %343 = vmatprep.subr.mxu0 0.0
    %344 = vmatpush2.msra.mxu0 0.0
    %345 = vmatprep.subr.mxu0 0.0
    %346 = vmatpush2.msra.mxu0 0.0
    %347 = vmatprep.subr.mxu0 0.0
    %348 = vmatpush2.msra.mxu0 0.0
    %349 = vmatprep.subr.mxu0 0.0
    %350 = vmatpush2.msra.mxu0 0.0
    %351 = vmatprep.subr.mxu0 0.0
    %352 = vmatpush2.msra.mxu0 0.0
    %353 = vmatprep.subr.mxu0 0.0
    %354 = vmatpush2.msra.mxu0 0.0
    %355 = vmatprep.subr.mxu0 0.0
    %356 = vmatpush2.msra.mxu0 0.0
    %357 = vmatprep.mubr.f32.mxu0 0.0
    %358 = vmatmul.mubr.f32.gmra.mxu0 %v268
    %v359 = vpop.f32.mrf.mxu0
    %v360 = vadd.f32 %v291, %v359
    %v361 = vpop.f32.mrf.mxu0
    %362 = vmatprep.mubr.f32.mxu0 0.0
    %363 = vmatmul.mubr.f32.gmra.mxu0 %v269
    %v364 = vpop.f32.mrf.mxu0
    %v365 = vadd.f32 %v291, %v364
    %v366 = vpop.f32.mrf.mxu0
    %367 = vdwg.mxu0
    %vm368 = vcmask 15360
    %369 = vst.msk [vmem:[%s7] sm:$0xff] %vm368, %v360
    %370 = vst.msk [vmem:[%s7 + $0x8] sm:$0xff] %vm368, %v365
    // Predicated region
    $region46: #{tpu_custom_call.1} parent=1 // pred_check
      _
    $region47: #{tpu_custom_call.1} parent=1 // pred_check_branch
      %372 = sbr.rel (0) target = $region49
    $region48: #{tpu_custom_call.1} parent=1 // pred_region
      _
    $region49: #{tpu_custom_call.1} parent=1 // pred_fallthru
      _
    // Predicated region
    $region50: #{tpu_custom_call.1} parent=1 // pred_check
      _
    $region51: #{tpu_custom_call.1} parent=1 // pred_check_branch
      %374 = sbr.rel (0) target = $region53
    $region52: #{tpu_custom_call.1} parent=1 // pred_region
      _
    $region53: #{tpu_custom_call.1} parent=1 // pred_fallthru
      _
    %375 = vsyncpa [#allocation3], 1
    %376 = vsyncpa [#allocation5], 1
    %377 = vsyncpa [#allocation8], 1

</llo_original>
